<compile_context>
chip_gen: v7x
topology: tpu7x:2x2x1
jax: 0.10.0
libtpu: 0.0.40
codegen_flags: <defaults>
</compile_context>

<pallas_src>
import math

import jax
import jax.numpy as jnp
from jax.experimental import pallas as pl
from jax.experimental.pallas import tpu as pltpu


def _conv1x1_kernel(x_ref, w_ref, b_ref, o_ref):
    """One (batch, spatial-tile) block of the pointwise channel mix.

    x_ref: (1, Cin,  TS)  activations, spatial on lanes
    w_ref: (Cout, Cin)    weights (resident across the whole grid)
    b_ref: (Cout, 1)      bias    (resident across the whole grid)
    o_ref: (1, Cout, TS)  output, spatial on lanes (lane-dense stores)
    """
    acc = jnp.dot(w_ref[...], x_ref[0], preferred_element_type=jnp.float32)
    o_ref[0] = (acc + b_ref[...]).astype(o_ref.dtype)


def _choose_spatial_tile(s, cin, cout, itemsize, max_tile_s, vmem_budget_bytes):
    """Largest lane tile (multiple of 128) that fits the VMEM budget."""
    s128 = ((s + 127) // 128) * 128
    # Double-buffered input + output blocks dominate the VMEM footprint.
    bytes_per_lane = 2 * (cin + cout) * itemsize
    by_vmem = max(128, (vmem_budget_bytes // bytes_per_lane) // 128 * 128)
    return max(128, min(max_tile_s, s128, by_vmem))


def output_mod_forward(x, weight, bias, *, max_tile_s=8192,
                       vmem_budget_bytes=32 * 1024 * 1024):
    """OutputMod.forward for kernel_size=1.

    x:      (N, Cin, D, H, W)    float32
    weight: (Cout, Cin, 1, 1, 1)
    bias:   (Cout,)
    returns (N, Cout, D, H, W)
    """
    N, Cin, D, H, W = x.shape
    Cout = weight.shape[0]
    assert weight.shape == (Cout, Cin, 1, 1, 1)
    S = D * H * W

    x3 = x.reshape(N, Cin, S)            # free view: NCDHW stays put in HBM
    w2 = weight.reshape(Cout, Cin)
    b2 = bias.reshape(Cout, 1)

    tile_s = _choose_spatial_tile(S, Cin, Cout, x.dtype.itemsize,
                                  max_tile_s, vmem_budget_bytes)
    num_s = pl.cdiv(S, tile_s)
    s_pad = num_s * tile_s
    if s_pad != S:
        # Ragged spatial tail: pad to a tile multiple, slice off afterwards.
        x3 = jnp.pad(x3, ((0, 0), (0, 0), (0, s_pad - S)))

    out3 = pl.pallas_call(
        _conv1x1_kernel,
        out_shape=jax.ShapeDtypeStruct((N, Cout, s_pad), x.dtype),
        grid_spec=pltpu.PrefetchScalarGridSpec(
            num_scalar_prefetch=0,
            grid=(N, num_s),
            in_specs=[
                pl.BlockSpec((1, Cin, tile_s), lambda n, s: (n, 0, s)),
                pl.BlockSpec((Cout, Cin), lambda n, s: (0, 0)),
                pl.BlockSpec((Cout, 1), lambda n, s: (0, 0)),
            ],
            out_specs=pl.BlockSpec((1, Cout, tile_s), lambda n, s: (n, 0, s)),
        ),
        compiler_params=pltpu.CompilerParams(
            dimension_semantics=("parallel", "parallel"),
            vmem_limit_bytes=48 * 1024 * 1024,   # stays within v7x's 64 MiB VMEM
        ),
    )(x3, w2, b2)

    if s_pad != S:
        out3 = out3[:, :, :S]
    return out3.reshape(N, Cout, D, H, W)    # free view back to NCDHW


def init_output_mod_params(key, in_channels, out_channels, kernel_size=1):
    """Deterministic MSRA (kaiming_normal, fan_in, gain=sqrt(2)) init + zero bias."""
    kd = kh = kw = kernel_size
    fan_in = in_channels * kd * kh * kw
    std = math.sqrt(2.0 / fan_in)
    weight = std * jax.random.normal(
        key, (out_channels, in_channels, kd, kh, kw), dtype=jnp.float32)
    bias = jnp.zeros((out_channels,), dtype=jnp.float32)
    return weight, bias


if __name__ == "__main__":
    # Small shapes consistent with the module: in_channels=8, out_spec=4,
    # batch=2, spatial depth/height/width = 8/16/16 (S = 2048).
    N, Cin, Cout, D, H, W = 2, 8, 4, 8, 16, 16

    key = jax.random.PRNGKey(0)
    k_w, k_x = jax.random.split(key)

    weight, bias = init_output_mod_params(k_w, Cin, Cout, kernel_size=1)
    # Non-zero bias so the reference check actually exercises the bias path.
    bias = bias + 0.1 * jnp.arange(Cout, dtype=jnp.float32)
    x = jax.random.normal(k_x, (N, Cin, D, H, W), dtype=jnp.float32)

    # Small max_tile_s so the spatial grid axis really iterates in this demo
    # (production default of 8192 lanes would cover S=2048 in one block).
    y = output_mod_forward(x, weight, bias, max_tile_s=1024)
    y = jax.block_until_ready(y)

    # Reference: plain-JAX 1x1x1 conv (einsum over channel dim) + bias.
    y_ref = jnp.einsum("ncdhw,oc->nodhw", x, weight.reshape(Cout, Cin)) \
        + bias.reshape(1, Cout, 1, 1, 1)

    assert y.shape == (N, Cout, D, H, W)
    assert jnp.allclose(y, y_ref, atol=1e-5, rtol=1e-5)

    print("KERNEL_OK")
</pallas_src>

<mosaic_0001>
module attributes {stable_mosaic.version = 11 : i64} {
  func.func @_conv1x1_kernel(%arg0: i32, %arg1: i32, %arg2: memref<1x8x1024xf32, #tpu.memory_space<vmem>>, %arg3: memref<4x8xf32, #tpu.memory_space<vmem>>, %arg4: memref<4x1xf32, #tpu.memory_space<vmem>>, %arg5: memref<1x4x1024xf32, #tpu.memory_space<vmem>>) attributes {dimension_semantics = [#tpu.dimension_semantics<parallel>, #tpu.dimension_semantics<parallel>], iteration_bounds = array<i64: 2, 2>, scalar_prefetch = 0 : i64, scratch_operands = 0 : i64, tpu.core_type = #tpu.core_type<tc>, window_params = [{transform_indices = @transform_0, window_bounds = array<i64: 1, 8, 1024>}, {pipeline_mode = #tpu.pipeline_mode<synchronous>, transform_indices = @transform_1, window_bounds = array<i64: 4, 8>}, {pipeline_mode = #tpu.pipeline_mode<synchronous>, transform_indices = @transform_2, window_bounds = array<i64: 4, 1>}, {transform_indices = @transform_3, window_bounds = array<i64: 1, 4, 1024>}]} {
    %c0 = arith.constant 0 : index
    %c0_0 = arith.constant 0 : index
    %0 = vector.load %arg3[%c0, %c0_0] : memref<4x8xf32, #tpu.memory_space<vmem>>, vector<4x8xf32>
    %c0_1 = arith.constant 0 : index
    %c0_2 = arith.constant 0 : index
    %c0_3 = arith.constant 0 : index
    %1 = vector.load %arg2[%c0_1, %c0_2, %c0_3] : memref<1x8x1024xf32, #tpu.memory_space<vmem>>, vector<1x8x1024xf32>
    %2 = vector.shape_cast %1 : vector<1x8x1024xf32> to vector<8x1024xf32>
    %cst = arith.constant dense<0.000000e+00> : vector<4x1024xf32>
    %3 = tpu.matmul %0, %2, %cst {dimension_numbers = #tpu.dot_dimension_numbers<[1], [0], [0], [1], [0, 0, 1, 1], [], []>} : vector<4x8xf32>, vector<8x1024xf32>, vector<4x1024xf32> -> vector<4x1024xf32>
    %c0_4 = arith.constant 0 : index
    %c0_5 = arith.constant 0 : index
    %4 = vector.load %arg4[%c0_4, %c0_5] : memref<4x1xf32, #tpu.memory_space<vmem>>, vector<4x1xf32>
    %5 = vector.broadcast %4 : vector<4x1xf32> to vector<4x1024xf32>
    %6 = arith.addf %3, %5 : vector<4x1024xf32>
    %c0_6 = arith.constant 0 : index
    %c0_7 = arith.constant 0 : index
    %c0_8 = arith.constant 0 : index
    %7 = vector.load %arg5[%c0_6, %c0_7, %c0_8] : memref<1x4x1024xf32, #tpu.memory_space<vmem>>, vector<1x4x1024xf32>
    %8 = vector.shape_cast %7 : vector<1x4x1024xf32> to vector<4x1024xf32>
    %9 = vector.shape_cast %6 : vector<4x1024xf32> to vector<1x4x1024xf32>
    tpu.vector_store %arg5[%c0_6, %c0_7, %c0_8], %9 {strides = array<i32>} : memref<1x4x1024xf32, #tpu.memory_space<vmem>>, vector<1x4x1024xf32>,
    return
  }
  func.func @transform_0(%arg0: i32, %arg1: i32) -> (i32, i32, i32) {
    %c0_i32 = arith.constant 0 : i32
    %c0_i32_0 = arith.constant 0 : i32
    return %arg0, %c0_i32, %arg1 : i32, i32, i32
  }
  func.func @transform_1(%arg0: i32, %arg1: i32) -> (i32, i32) {
    %c0_i32 = arith.constant 0 : i32
    %c0_i32_0 = arith.constant 0 : i32
    %c0_i32_1 = arith.constant 0 : i32
    return %c0_i32, %c0_i32_0 : i32, i32
  }
  func.func @transform_2(%arg0: i32, %arg1: i32) -> (i32, i32) {
    %c0_i32 = arith.constant 0 : i32
    %c0_i32_0 = arith.constant 0 : i32
    %c0_i32_1 = arith.constant 0 : i32
    return %c0_i32, %c0_i32_0 : i32, i32
  }
  func.func @transform_3(%arg0: i32, %arg1: i32) -> (i32, i32, i32) {
    %c0_i32 = arith.constant 0 : i32
    %c0_i32_0 = arith.constant 0 : i32
    return %arg0, %c0_i32, %arg1 : i32, i32, i32
  }
}

</mosaic_0001>

<llo_original>
// kernel: tpu_custom_call.1
$region0: #{tpu_custom_call.1}
  #allocation0 [shape = 'u32[]', space=smem, size = 0x4, offset = 0x4, fixed_abs, tag = 'smem constant byte address 0x4 - core index']
  #allocation1 [shape = 'u32[144,128]{1,0:T(1,128)}', space=vmem, size = 0x12000, scoped, tag = 'internal scratch']
  %s0 = inlined_call_operand.hbm [shape: f32[2,8,2048], index: 0, kind: input, shape index: {}]
  %s1 = inlined_call_operand.vmem [shape: f32[4,8], index: 1, kind: input, shape index: {}]
  %s2 = inlined_call_operand.vmem [shape: f32[4,1], index: 2, kind: input, shape index: {}]
  %s3 = inlined_call_operand.hbm [shape: f32[2,4,2048], index: 3, kind: output, shape index: {}]
  %s4 = sld [smem:[#allocation0]]
  $region49: #{tpu_custom_call.1} parent=0
    _
  %s6 = ssub.s32 1, %s4
  %s7 = scalar_select 0, %s6, %s4
  $region1: #{tpu_custom_call.1} parent=0
    #allocation2 [shape = 'u8[65536]{0}', space=vmem, size = 0x10000, scoped, tag = 'input window, operand 0']
    #allocation3 [shape = 's32[2]{0}', space=sflag, size = 0x8, scoped, tag = 'scoped memory for tpu_custom_call.1']
    #allocation4 [shape = 's32[2]{0}', space=sflag, size = 0x8, scoped, tag = 'scoped memory for tpu_custom_call.1']
    #allocation5 [shape = 'u8[32768]{0}', space=vmem, size = 0x8000, scoped, tag = 'output window, operand 0']
    %8 = vsyncpa [#allocation3], 0
    %s9 = scalar_lea.sflag [#allocation3], 1
    %10 = vsyncpa %s9, 0
    %11 = vsyncpa [#allocation4], 0
    %s12 = scalar_lea.sflag [#allocation4], 1
    %13 = vsyncpa %s12, 0
    loop: start=0, step=1, limit=6
    $region2: #{tpu_custom_call.1} parent=1 // loop_pre_header
      _
    $region3: #{tpu_custom_call.1} parent=1 // loop_header
      %s15 = sphi 0, %s19
      %p16 = scmp.ge.s32.totalorder %s15, 6
      %s22 = sphi 0, %s34
      %s23 = sphi 0, %s30
      %s24 = sphi 0, %s22
      %s25 = sphi 0, %s23
      %s26 = sphi 0, %s24
      %s27 = sphi 0, %s25
      %s39 = sphi 0, %s41
      %s42 = sphi 0, %s39
      %s43 = sphi 0, %s42
      %s59 = sphi 0, %s43
      %s63 = sphi 0, %s63
      %s65 = sphi 0, %s63
      %s66 = sphi 0, %s65
      %s80 = sphi 0, %s66
      %s84 = sphi 0, %s84
      %s86 = sphi 0, %s84
      %s87 = sphi 0, %s86
      %s101 = sphi 0, %s87
      %s109 = sphi 0, %s111
      %s112 = sphi 0, %s109
      %s113 = sphi 0, %s112
      %s129 = sphi 0, %s113
    $region4: #{tpu_custom_call.1} parent=1 // loop_header_branch
      %18 = sbr.rel (%p16) target = $region8
    $region5: #{tpu_custom_call.1} parent=1 // loop_body
      %s20 = ssub.s32 %s15, 1
      %s21 = ssub.s32 %s15, 2
      %s28 = sadd.s32 1, %s23
      %p29 = scmp.ge.s32.totalorder %s28, 2
      %s30 = scalar_select %p29, 0, %s28
      %s31 = sadd.s32 1, %s22
      %s32 = scalar_select %p29, %s31, %s22
      %p33 = scmp.ge.s32.totalorder %s32, 2
      %s34 = scalar_select %p33, 0, %s32
      %s35 = ssub.s32 %s22, %s34
      %s36 = ssub.s32 %s23, %s30
      %s37 = sor.u32 %s35, %s36
      %p38 = scmp.eq.s32.totalorder %s37, 0
      %s40 = sadd.s32 %s39, 1
      %s41 = scalar_select %p38, %s39, %s40
      %p44 = pneg %p38
      %p45 = scmp.eq.s32.totalorder %s15, 3
      %p46 = por %p44, %p45
      %p47 = scmp.ne.s32.totalorder %s39, %s42
      %p48 = scmp.eq.s32.totalorder %s15, 0
      %p49 = por %p47, %p48
      %p50 = scmp.ne.s32.totalorder %s39, %s42
      %p51 = scmp.eq.s32.totalorder %s20, 3
      %p52 = por %p50, %p51
      %p53 = scmp.ne.s32.totalorder %s42, %s43
      %p54 = scmp.eq.s32.totalorder %s20, 0
      %p55 = por %p53, %p54
      %p56 = scmp.ne.s32.totalorder %s42, %s43
      %p57 = scmp.eq.s32.totalorder %s21, 3
      %p58 = por %p56, %p57
      %p60 = scmp.ne.s32.totalorder %s43, %s59
      %p61 = scmp.eq.s32.totalorder %s21, 0
      %p62 = por %p60, %p61
      %s64 = sadd.s32 %s63, 1
      %p67 = scmp.eq.s32.totalorder %s15, 3
      %p68 = scmp.ne.s32.totalorder %s63, %s65
      %p69 = scmp.eq.s32.totalorder %s15, 0
      %p70 = por %p68, %p69
      %p71 = scmp.ne.s32.totalorder %s63, %s65
      %p72 = scmp.eq.s32.totalorder %s20, 3
      %p73 = por %p71, %p72
      %p74 = scmp.ne.s32.totalorder %s65, %s66
      %p75 = scmp.eq.s32.totalorder %s20, 0
      %p76 = por %p74, %p75
      %p77 = scmp.ne.s32.totalorder %s65, %s66
      %p78 = scmp.eq.s32.totalorder %s21, 3
      %p79 = por %p77, %p78
      %p81 = scmp.ne.s32.totalorder %s66, %s80
      %p82 = scmp.eq.s32.totalorder %s21, 0
      %p83 = por %p81, %p82
      %s85 = sadd.s32 %s84, 1
      %p88 = scmp.eq.s32.totalorder %s15, 3
      %p89 = scmp.ne.s32.totalorder %s84, %s86
      %p90 = scmp.eq.s32.totalorder %s15, 0
      %p91 = por %p89, %p90
      %p92 = scmp.ne.s32.totalorder %s84, %s86
      %p93 = scmp.eq.s32.totalorder %s20, 3
      %p94 = por %p92, %p93
      %p95 = scmp.ne.s32.totalorder %s86, %s87
      %p96 = scmp.eq.s32.totalorder %s20, 0
      %p97 = por %p95, %p96
      %p98 = scmp.ne.s32.totalorder %s86, %s87
      %p99 = scmp.eq.s32.totalorder %s21, 3
      %p100 = por %p98, %p99
      %p102 = scmp.ne.s32.totalorder %s87, %s101
      %p103 = scmp.eq.s32.totalorder %s21, 0
      %p104 = por %p102, %p103
      %s105 = ssub.s32 %s22, %s34
      %s106 = ssub.s32 %s23, %s30
      %s107 = sor.u32 %s105, %s106
      %p108 = scmp.eq.s32.totalorder %s107, 0
      %s110 = sadd.s32 %s109, 1
      %s111 = scalar_select %p108, %s109, %s110
      %p114 = pneg %p108
      %p115 = scmp.eq.s32.totalorder %s15, 3
      %p116 = por %p114, %p115
      %p117 = scmp.ne.s32.totalorder %s109, %s112
      %p118 = scmp.eq.s32.totalorder %s15, 0
      %p119 = por %p117, %p118
      %p120 = scmp.ne.s32.totalorder %s109, %s112
      %p121 = scmp.eq.s32.totalorder %s20, 3
      %p122 = por %p120, %p121
      %p123 = scmp.ne.s32.totalorder %s112, %s113
      %p124 = scmp.eq.s32.totalorder %s20, 0
      %p125 = por %p123, %p124
      %p126 = scmp.ne.s32.totalorder %s112, %s113
      %p127 = scmp.eq.s32.totalorder %s21, 3
      %p128 = por %p126, %p127
      %p130 = scmp.ne.s32.totalorder %s113, %s129
      %p131 = scmp.eq.s32.totalorder %s21, 0
      %p132 = por %p130, %p131
      %p133 = scmp.le.s32.totalorder 1, %s15
      %p134 = scmp.lt.s32.totalorder %s15, 5
      %p135 = pnand %p133, %p134
      %p136 = pneg %p135
      // Predicated region
      $region9: #{tpu_custom_call.1} parent=5 // pred_check
        _
      $region10: #{tpu_custom_call.1} parent=5 // pred_check_branch
        %138 = sbr.rel (%p135) target = $region12
      $region11: #{tpu_custom_call.1} parent=5 // pred_region
        %s139 = ssub.s32 %s15, 1
        // Predicated region
        $region13: #{tpu_custom_call.1} parent=11 // pred_check
          %p140 = pneg %p76
        $region14: #{tpu_custom_call.1} parent=11 // pred_check_branch
          %142 = sbr.rel (%p140) target = $region16
        $region15: #{tpu_custom_call.1} parent=11 // pred_region
          _
        $region16: #{tpu_custom_call.1} parent=11 // pred_fallthru
          _
        // Predicated region
        $region17: #{tpu_custom_call.1} parent=11 // pred_check
          %p143 = pneg %p97
        $region18: #{tpu_custom_call.1} parent=11 // pred_check_branch
          %145 = sbr.rel (%p143) target = $region20
        $region19: #{tpu_custom_call.1} parent=11 // pred_region
          _
        $region20: #{tpu_custom_call.1} parent=11 // pred_fallthru
          _
      $region12: #{tpu_custom_call.1} parent=5 // pred_fallthru
        _
      %p146 = scmp.lt.s32.totalorder %s15, 4
      // Predicated region
      $region21: #{tpu_custom_call.1} parent=5 // pred_check
        %p147 = pneg %p146
      $region22: #{tpu_custom_call.1} parent=5 // pred_check_branch
        %149 = sbr.rel (%p147) target = $region24
      $region23: #{tpu_custom_call.1} parent=5 // pred_region
        // Predicated region
        $region25: #{tpu_custom_call.1} parent=23 // pred_check
          %p150 = pneg %p49
        $region26: #{tpu_custom_call.1} parent=23 // pred_check_branch
          %152 = sbr.rel (%p150) target = $region28
        $region27: #{tpu_custom_call.1} parent=23 // pred_region
          %s153 = sand.u32 %s39, 1
          %s154 = scalar_lea.sflag [#allocation3], %s153
          %s155 = sand.u32 %s39, 1
          %s156 = smul.addr %s155, 64
          %s157 = scalar_lea.vmem [#allocation2], %s156
          %s158 = smul.u32 8, %s23
          %s160 = ssub.s32 1024, 1024
          %161 = vsyncadd %s154, %s160
          %s162 = smul.addr %s22, 16
          %s163 = sadd.s32 %s158, %s162
          %s164 = smul.addr %s163, 128
          %s165 = scalar_lea.hbm %s0, %s164
          %s167 = sshll.u32 %s157, 4
          %s168 = int_to_ptr.vmem [resolvable:$true] %s167
          %170 = dma.hbm_to_vmem [thread:$0]  %s165, 1024, %s168, %s154
        $region28: #{tpu_custom_call.1} parent=23 // pred_fallthru
          _
      $region24: #{tpu_custom_call.1} parent=5 // pred_fallthru
        _
      %p171 = scmp.le.s32.totalorder 1, %s15
      %p172 = scmp.lt.s32.totalorder %s15, 5
      %p173 = pnand %p171, %p172
      %p174 = pneg %p173
      // Predicated region
      $region29: #{tpu_custom_call.1} parent=5 // pred_check
        _
      $region30: #{tpu_custom_call.1} parent=5 // pred_check_branch
        %176 = sbr.rel (%p173) target = $region32
      $region31: #{tpu_custom_call.1} parent=5 // pred_region
        %s177 = ssub.s32 %s15, 1
        %s178 = sand.u32 %s42, 1
        %s179 = scalar_lea.sflag [#allocation3], %s178
        %s180 = sand.u32 %s42, 1
        %s181 = smul.addr %s180, 64
        %s182 = scalar_lea.vmem [#allocation2], %s181
        // Predicated region
        $region33: #{tpu_custom_call.1} parent=31 // pred_check
          %p183 = pneg %p55
        $region34: #{tpu_custom_call.1} parent=31 // pred_check_branch
          %185 = sbr.rel (%p183) target = $region36
        $region35: #{tpu_custom_call.1} parent=31 // pred_region
          %186 = dma.done %s179, 1024
        $region36: #{tpu_custom_call.1} parent=31 // pred_fallthru
          _
        %s187 = sand.u32 %s42, 1
        %s188 = scalar_lea.sflag [#allocation3], %s187
        %s189 = sand.u32 %s42, 1
        %s190 = smul.addr %s189, 64
        %s191 = scalar_lea.vmem [#allocation2], %s190
        %p192 = pneg %p55
        %p193 = pneg %p52
        %p194 = pneg %p76
        %p195 = pneg %p73
        %p196 = pneg %p97
        %p197 = pneg %p94
        %p198 = pneg %p125
        %p199 = pneg %p122
        %s200 = sand.u32 %s112, 1
        %s201 = scalar_lea.sflag [#allocation4], %s200
        %s202 = sand.u32 %s112, 1
        %s203 = smul.addr %s202, 32
        %s204 = scalar_lea.vmem [#allocation5], %s203
        %s205 = smul.u32 8, %s25
        %s206 = smul.u32 8, %s25
        %v207 = vld [vmem:[%s1] sm:$0xf]
        %v208 = vld [vmem:[%s182] sm:$0xff]
        %v209 = vld [vmem:[%s182 + $0x8] sm:$0xff]
        %v210 = vld [vmem:[%s182 + $0x10] sm:$0xff]
        %v211 = vld [vmem:[%s182 + $0x18] sm:$0xff]
        %v212 = vld [vmem:[%s182 + $0x20] sm:$0xff]
        %v213 = vld [vmem:[%s182 + $0x28] sm:$0xff]
        %v214 = vld [vmem:[%s182 + $0x30] sm:$0xff]
        %v215 = vld [vmem:[%s182 + $0x38] sm:$0xff]
        %v216 = vld [vmem:[%s2] sm:$0xf]
        %218 = vset.pattern.permute.xlu0 0
        %219 = vperm.xlu0 %218, %v216
        %v220 = vpop.permute.xlu0 %219
        %vm222 = vcmask 64512
        %v224 = vsel %vm222, %v207, 0
        %226 = vmatprep.subr.mxu0 %v209
        %227 = vmatpush1.msra.mxu0 %v208
        %228 = vmatprep.subr.mxu0 0.0
        %229 = vmatpush1.msra.mxu0 0.0
        %230 = vmatprep.subr.mxu0 0.0
        %231 = vmatpush1.msra.mxu0 0.0
        %232 = vmatprep.subr.mxu0 0.0
        %233 = vmatpush1.msra.mxu0 0.0
        %234 = vmatprep.subr.mxu0 0.0
        %235 = vmatpush1.msra.mxu0 0.0
        %236 = vmatprep.subr.mxu0 0.0
        %237 = vmatpush1.msra.mxu0 0.0
        %238 = vmatprep.subr.mxu0 0.0
        %239 = vmatpush1.msra.mxu0 0.0
        %240 = vmatprep.subr.mxu0 0.0
        %241 = vmatpush1.msra.mxu0 0.0
        %242 = vmatprep.subr.mxu0 0.0
        %243 = vmatpush1.msra.mxu0 0.0
        %244 = vmatprep.subr.mxu0 0.0
        %245 = vmatpush1.msra.mxu0 0.0
        %246 = vmatprep.subr.mxu0 0.0
        %247 = vmatpush1.msra.mxu0 0.0
        %248 = vmatprep.subr.mxu0 0.0
        %249 = vmatpush1.msra.mxu0 0.0
        %250 = vmatprep.subr.mxu0 0.0
        %251 = vmatpush1.msra.mxu0 0.0
        %252 = vmatprep.subr.mxu0 0.0
        %253 = vmatpush1.msra.mxu0 0.0
        %254 = vmatprep.subr.mxu0 0.0
        %255 = vmatpush1.msra.mxu0 0.0
        %256 = vmatprep.subr.mxu0 0.0
        %257 = vmatpush1.msra.mxu0 0.0
        %258 = vmatprep.subr.mxu0 0.0
        %259 = vmatpush1.msra.mxu0 0.0
        %260 = vmatprep.subr.mxu0 0.0
        %261 = vmatpush1.msra.mxu0 0.0
        %262 = vmatprep.subr.mxu0 0.0
        %263 = vmatpush1.msra.mxu0 0.0
        %264 = vmatprep.subr.mxu0 0.0
        %265 = vmatpush1.msra.mxu0 0.0
        %266 = vmatprep.subr.mxu0 0.0
        %267 = vmatpush1.msra.mxu0 0.0
        %268 = vmatprep.subr.mxu0 0.0
        %269 = vmatpush1.msra.mxu0 0.0
        %270 = vmatprep.subr.mxu0 0.0
        %271 = vmatpush1.msra.mxu0 0.0
        %272 = vmatprep.subr.mxu0 0.0
        %273 = vmatpush1.msra.mxu0 0.0
        %274 = vmatprep.subr.mxu0 0.0
        %275 = vmatpush1.msra.mxu0 0.0
        %276 = vmatprep.subr.mxu0 0.0
        %277 = vmatpush1.msra.mxu0 0.0
        %278 = vmatprep.subr.mxu0 0.0
        %279 = vmatpush1.msra.mxu0 0.0
        %280 = vmatprep.subr.mxu0 0.0
        %281 = vmatpush1.msra.mxu0 0.0
        %282 = vmatprep.subr.mxu0 0.0
        %283 = vmatpush1.msra.mxu0 0.0
        %284 = vmatprep.subr.mxu0 0.0
        %285 = vmatpush1.msra.mxu0 0.0
        %286 = vmatprep.subr.mxu0 0.0
        %287 = vmatpush1.msra.mxu0 0.0
        %288 = vmatprep.subr.mxu0 0.0
        %289 = vmatpush1.msra.mxu0 0.0
        %290 = vmatprep.mubr.f32.mxu0 0.0
        %291 = vmatmul.mubr.f32.gmra.mrb[0].mxu0 %v224
        %v292 = vpop.f32.mrb[0].mxu0
        %v293 = vadd.f32 %v220, %v292
        %v294 = vpop.f32.mrb[0].mxu0
        %v295 = vadd.f32 %v220, %v294
        %296 = vdwg.mxu0
        %297 = vmatprep.subr.mxu0 %v211
        %298 = vmatpush1.msra.mxu0 %v210
        %299 = vmatprep.subr.mxu0 0.0
        %300 = vmatpush1.msra.mxu0 0.0
        %301 = vmatprep.subr.mxu0 0.0
        %302 = vmatpush1.msra.mxu0 0.0
        %303 = vmatprep.subr.mxu0 0.0
        %304 = vmatpush1.msra.mxu0 0.0
        %305 = vmatprep.subr.mxu0 0.0
        %306 = vmatpush1.msra.mxu0 0.0
        %307 = vmatprep.subr.mxu0 0.0
        %308 = vmatpush1.msra.mxu0 0.0
        %309 = vmatprep.subr.mxu0 0.0
        %310 = vmatpush1.msra.mxu0 0.0
        %311 = vmatprep.subr.mxu0 0.0
        %312 = vmatpush1.msra.mxu0 0.0
        %313 = vmatprep.subr.mxu0 0.0
        %314 = vmatpush1.msra.mxu0 0.0
        %315 = vmatprep.subr.mxu0 0.0
        %316 = vmatpush1.msra.mxu0 0.0
        %317 = vmatprep.subr.mxu0 0.0
        %318 = vmatpush1.msra.mxu0 0.0
        %319 = vmatprep.subr.mxu0 0.0
        %320 = vmatpush1.msra.mxu0 0.0
        %321 = vmatprep.subr.mxu0 0.0
        %322 = vmatpush1.msra.mxu0 0.0
        %323 = vmatprep.subr.mxu0 0.0
        %324 = vmatpush1.msra.mxu0 0.0
        %325 = vmatprep.subr.mxu0 0.0
        %326 = vmatpush1.msra.mxu0 0.0
        %327 = vmatprep.subr.mxu0 0.0
        %328 = vmatpush1.msra.mxu0 0.0
        %329 = vmatprep.subr.mxu0 0.0
        %330 = vmatpush1.msra.mxu0 0.0
        %331 = vmatprep.subr.mxu0 0.0
        %332 = vmatpush1.msra.mxu0 0.0
        %333 = vmatprep.subr.mxu0 0.0
        %334 = vmatpush1.msra.mxu0 0.0
        %335 = vmatprep.subr.mxu0 0.0
        %336 = vmatpush1.msra.mxu0 0.0
        %337 = vmatprep.subr.mxu0 0.0
        %338 = vmatpush1.msra.mxu0 0.0
        %339 = vmatprep.subr.mxu0 0.0
        %340 = vmatpush1.msra.mxu0 0.0
        %341 = vmatprep.subr.mxu0 0.0
        %342 = vmatpush1.msra.mxu0 0.0
        %343 = vmatprep.subr.mxu0 0.0
        %344 = vmatpush1.msra.mxu0 0.0
        %345 = vmatprep.subr.mxu0 0.0
        %346 = vmatpush1.msra.mxu0 0.0
        %347 = vmatprep.subr.mxu0 0.0
        %348 = vmatpush1.msra.mxu0 0.0
        %349 = vmatprep.subr.mxu0 0.0
        %350 = vmatpush1.msra.mxu0 0.0
        %351 = vmatprep.subr.mxu0 0.0
        %352 = vmatpush1.msra.mxu0 0.0
        %353 = vmatprep.subr.mxu0 0.0
        %354 = vmatpush1.msra.mxu0 0.0
        %355 = vmatprep.subr.mxu0 0.0
        %356 = vmatpush1.msra.mxu0 0.0
        %357 = vmatprep.subr.mxu0 0.0
        %358 = vmatpush1.msra.mxu0 0.0
        %359 = vmatprep.subr.mxu0 0.0
        %360 = vmatpush1.msra.mxu0 0.0
        %361 = vmatprep.mubr.f32.mxu0 0.0
        %362 = vmatmul.mubr.f32.gmra.mrb[0].mxu0 %v224
        %v363 = vpop.f32.mrb[0].mxu0
        %v364 = vadd.f32 %v220, %v363
        %v365 = vpop.f32.mrb[0].mxu0
        %v366 = vadd.f32 %v220, %v365
        %367 = vdwg.mxu0
        %368 = vmatprep.subr.mxu0 %v213
        %369 = vmatpush1.msra.mxu0 %v212
        %370 = vmatprep.subr.mxu0 0.0
        %371 = vmatpush1.msra.mxu0 0.0
        %372 = vmatprep.subr.mxu0 0.0
        %373 = vmatpush1.msra.mxu0 0.0
        %374 = vmatprep.subr.mxu0 0.0
        %375 = vmatpush1.msra.mxu0 0.0
        %376 = vmatprep.subr.mxu0 0.0
        %377 = vmatpush1.msra.mxu0 0.0
        %378 = vmatprep.subr.mxu0 0.0
        %379 = vmatpush1.msra.mxu0 0.0
        %380 = vmatprep.subr.mxu0 0.0
        %381 = vmatpush1.msra.mxu0 0.0
        %382 = vmatprep.subr.mxu0 0.0
        %383 = vmatpush1.msra.mxu0 0.0
        %384 = vmatprep.subr.mxu0 0.0
        %385 = vmatpush1.msra.mxu0 0.0
        %386 = vmatprep.subr.mxu0 0.0
        %387 = vmatpush1.msra.mxu0 0.0
        %388 = vmatprep.subr.mxu0 0.0
        %389 = vmatpush1.msra.mxu0 0.0
        %390 = vmatprep.subr.mxu0 0.0
        %391 = vmatpush1.msra.mxu0 0.0
        %392 = vmatprep.subr.mxu0 0.0
        %393 = vmatpush1.msra.mxu0 0.0
        %394 = vmatprep.subr.mxu0 0.0
        %395 = vmatpush1.msra.mxu0 0.0
        %396 = vmatprep.subr.mxu0 0.0
        %397 = vmatpush1.msra.mxu0 0.0
        %398 = vmatprep.subr.mxu0 0.0
        %399 = vmatpush1.msra.mxu0 0.0
        %400 = vmatprep.subr.mxu0 0.0
        %401 = vmatpush1.msra.mxu0 0.0
        %402 = vmatprep.subr.mxu0 0.0
        %403 = vmatpush1.msra.mxu0 0.0
        %404 = vmatprep.subr.mxu0 0.0
        %405 = vmatpush1.msra.mxu0 0.0
        %406 = vmatprep.subr.mxu0 0.0
        %407 = vmatpush1.msra.mxu0 0.0
        %408 = vmatprep.subr.mxu0 0.0
        %409 = vmatpush1.msra.mxu0 0.0
        %410 = vmatprep.subr.mxu0 0.0
        %411 = vmatpush1.msra.mxu0 0.0
        %412 = vmatprep.subr.mxu0 0.0
        %413 = vmatpush1.msra.mxu0 0.0
        %414 = vmatprep.subr.mxu0 0.0
        %415 = vmatpush1.msra.mxu0 0.0
        %416 = vmatprep.subr.mxu0 0.0
        %417 = vmatpush1.msra.mxu0 0.0
        %418 = vmatprep.subr.mxu0 0.0
        %419 = vmatpush1.msra.mxu0 0.0
        %420 = vmatprep.subr.mxu0 0.0
        %421 = vmatpush1.msra.mxu0 0.0
        %422 = vmatprep.subr.mxu0 0.0
        %423 = vmatpush1.msra.mxu0 0.0
        %424 = vmatprep.subr.mxu0 0.0
        %425 = vmatpush1.msra.mxu0 0.0
        %426 = vmatprep.subr.mxu0 0.0
        %427 = vmatpush1.msra.mxu0 0.0
        %428 = vmatprep.subr.mxu0 0.0
        %429 = vmatpush1.msra.mxu0 0.0
        %430 = vmatprep.subr.mxu0 0.0
        %431 = vmatpush1.msra.mxu0 0.0
        %432 = vmatprep.mubr.f32.mxu0 0.0
        %433 = vmatmul.mubr.f32.gmra.mrb[0].mxu0 %v224
        %v434 = vpop.f32.mrb[0].mxu0
        %v435 = vadd.f32 %v220, %v434
        %v436 = vpop.f32.mrb[0].mxu0
        %v437 = vadd.f32 %v220, %v436
        %438 = vdwg.mxu0
        %439 = vmatprep.subr.mxu0 %v215
        %440 = vmatpush1.msra.mxu0 %v214
        %441 = vmatprep.subr.mxu0 0.0
        %442 = vmatpush1.msra.mxu0 0.0
        %443 = vmatprep.subr.mxu0 0.0
        %444 = vmatpush1.msra.mxu0 0.0
        %445 = vmatprep.subr.mxu0 0.0
        %446 = vmatpush1.msra.mxu0 0.0
        %447 = vmatprep.subr.mxu0 0.0
        %448 = vmatpush1.msra.mxu0 0.0
        %449 = vmatprep.subr.mxu0 0.0
        %450 = vmatpush1.msra.mxu0 0.0
        %451 = vmatprep.subr.mxu0 0.0
        %452 = vmatpush1.msra.mxu0 0.0
        %453 = vmatprep.subr.mxu0 0.0
        %454 = vmatpush1.msra.mxu0 0.0
        %455 = vmatprep.subr.mxu0 0.0
        %456 = vmatpush1.msra.mxu0 0.0
        %457 = vmatprep.subr.mxu0 0.0
        %458 = vmatpush1.msra.mxu0 0.0
        %459 = vmatprep.subr.mxu0 0.0
        %460 = vmatpush1.msra.mxu0 0.0
        %461 = vmatprep.subr.mxu0 0.0
        %462 = vmatpush1.msra.mxu0 0.0
        %463 = vmatprep.subr.mxu0 0.0
        %464 = vmatpush1.msra.mxu0 0.0
        %465 = vmatprep.subr.mxu0 0.0
        %466 = vmatpush1.msra.mxu0 0.0
        %467 = vmatprep.subr.mxu0 0.0
        %468 = vmatpush1.msra.mxu0 0.0
        %469 = vmatprep.subr.mxu0 0.0
        %470 = vmatpush1.msra.mxu0 0.0
        %471 = vmatprep.subr.mxu0 0.0
        %472 = vmatpush1.msra.mxu0 0.0
        %473 = vmatprep.subr.mxu0 0.0
        %474 = vmatpush1.msra.mxu0 0.0
        %475 = vmatprep.subr.mxu0 0.0
        %476 = vmatpush1.msra.mxu0 0.0
        %477 = vmatprep.subr.mxu0 0.0
        %478 = vmatpush1.msra.mxu0 0.0
        %479 = vmatprep.subr.mxu0 0.0
        %480 = vmatpush1.msra.mxu0 0.0
        %481 = vmatprep.subr.mxu0 0.0
        %482 = vmatpush1.msra.mxu0 0.0
        %483 = vmatprep.subr.mxu0 0.0
        %484 = vmatpush1.msra.mxu0 0.0
        %485 = vmatprep.subr.mxu0 0.0
        %486 = vmatpush1.msra.mxu0 0.0
        %487 = vmatprep.subr.mxu0 0.0
        %488 = vmatpush1.msra.mxu0 0.0
        %489 = vmatprep.subr.mxu0 0.0
        %490 = vmatpush1.msra.mxu0 0.0
        %491 = vmatprep.subr.mxu0 0.0
        %492 = vmatpush1.msra.mxu0 0.0
        %493 = vmatprep.subr.mxu0 0.0
        %494 = vmatpush1.msra.mxu0 0.0
        %495 = vmatprep.subr.mxu0 0.0
        %496 = vmatpush1.msra.mxu0 0.0
        %497 = vmatprep.subr.mxu0 0.0
        %498 = vmatpush1.msra.mxu0 0.0
        %499 = vmatprep.subr.mxu0 0.0
        %500 = vmatpush1.msra.mxu0 0.0
        %501 = vmatprep.subr.mxu0 0.0
        %502 = vmatpush1.msra.mxu0 0.0
        %503 = vmatprep.mubr.f32.mxu0 0.0
        %504 = vmatmul.mubr.f32.gmra.mrb[0].mxu0 %v224
        %v505 = vpop.f32.mrb[0].mxu0
        %v506 = vadd.f32 %v220, %v505
        %v507 = vpop.f32.mrb[0].mxu0
        %v508 = vadd.f32 %v220, %v507
        %509 = vdwg.mxu0
        %v518 = vcombine.low %v293, %v295
        %v519 = vcombine.low %v364, %v366
        %v520 = vcombine.low %v435, %v437
        %v521 = vcombine.low %v506, %v508
        %526 = vst [vmem:[%s204] sm:$0xff] %v518
        %527 = vst [vmem:[%s204 + $0x8] sm:$0xff] %v519
        %528 = vst [vmem:[%s204 + $0x10] sm:$0xff] %v520
        %529 = vst [vmem:[%s204 + $0x18] sm:$0xff] %v521
        %s530 = sand.u32 %s112, 1
        %s531 = scalar_lea.sflag [#allocation4], %s530
        %s532 = sand.u32 %s112, 1
        %s533 = smul.addr %s532, 32
        %s534 = scalar_lea.vmem [#allocation5], %s533
        // Predicated region
        $region37: #{tpu_custom_call.1} parent=31 // pred_check
          %p535 = pneg %p122
        $region38: #{tpu_custom_call.1} parent=31 // pred_check_branch
          %537 = sbr.rel (%p535) target = $region40
        $region39: #{tpu_custom_call.1} parent=31 // pred_region
          %s538 = smul.u32 8, %s25
          %s540 = ssub.s32 512, 512
          %541 = vsyncadd %s531, %s540
          %s542 = smul.addr %s24, 16
          %s543 = sadd.s32 %s538, %s542
          %s544 = smul.addr %s543, 64
          %s545 = scalar_lea.hbm %s3, %s544
          %s547 = sshll.u32 %s534, 4
          %s548 = int_to_ptr.vmem [resolvable:$true] %s547
          %550 = dma.vmem_to_hbm [thread:$0]  %s548, 512, %s545, %s531
        $region40: #{tpu_custom_call.1} parent=31 // pred_fallthru
          _
      $region32: #{tpu_custom_call.1} parent=5 // pred_fallthru
        _
      %p551 = scmp.le.s32.totalorder 2, %s15
      // Predicated region
      $region41: #{tpu_custom_call.1} parent=5 // pred_check
        %p552 = pneg %p551
      $region42: #{tpu_custom_call.1} parent=5 // pred_check_branch
        %554 = sbr.rel (%p552) target = $region44
      $region43: #{tpu_custom_call.1} parent=5 // pred_region
        %s555 = ssub.s32 %s15, 2
        // Predicated region
        $region45: #{tpu_custom_call.1} parent=43 // pred_check
          %p556 = pneg %p128
        $region46: #{tpu_custom_call.1} parent=43 // pred_check_branch
          %558 = sbr.rel (%p556) target = $region48
        $region47: #{tpu_custom_call.1} parent=43 // pred_region
          %s559 = sand.u32 %s113, 1
          %s560 = scalar_lea.sflag [#allocation4], %s559
          %s561 = sand.u32 %s113, 1
          %s562 = smul.addr %s561, 32
          %s563 = scalar_lea.vmem [#allocation5], %s562
          %564 = dma.done %s560, 512
        $region48: #{tpu_custom_call.1} parent=43 // pred_fallthru
          _
      $region44: #{tpu_custom_call.1} parent=5 // pred_fallthru
        _
    $region6: #{tpu_custom_call.1} parent=1 // loop_footer
      %s19 = sadd.s32 1, %s15
    $region7: #{tpu_custom_call.1} parent=1 // loop_footer_branch
      %14 = sbr.rel target = $region3
    $region8: #{tpu_custom_call.1} parent=1 // loop_exit
      _
    %565 = vsyncpa [#allocation3], 1
    %s566 = scalar_lea.sflag [#allocation3], 1
    %567 = vsyncpa %s566, 1
    %568 = vsyncpa [#allocation4], 1
    %s569 = scalar_lea.sflag [#allocation4], 1
    %570 = vsyncpa %s569, 1

</llo_original>
